<compile_context>
chip_gen: v7x
topology: tpu7x:2x2x1
jax: 0.10.0
libtpu: 0.0.40
codegen_flags: <defaults>
</compile_context>

<pallas_src>
import jax
import jax.numpy as jnp
from jax.experimental import pallas as pl
from jax.experimental.pallas import tpu as pltpu


def _round_up(n, m):
    return ((n + m - 1) // m) * m


def _leaky_relu(v, slope=0.2):
    return jnp.where(v > 0, v, slope * v)


def vae_kernel(
    x_ref, eps_ref,
    we1_ref, be1_ref, we2_ref, be2_ref,
    wml_ref, bml_ref,                      # fused [mean | logvar] head
    wd1_ref, bd1_ref, wd2_ref, bd2_ref, wd3_ref, bd3_ref,
    xhat_ref, ml_ref,
):
    lp = wd1_ref.shape[0]                  # padded latent dim

    def linear(a, w_ref, b_ref):
        # Cast activations to the weight dtype (bf16 path on v6e/v7x when enabled);
        # accumulate in f32 on the MXU; bias add stays f32 on the VPU.
        return jnp.dot(a.astype(w_ref.dtype), w_ref[...],
                       preferred_element_type=jnp.float32) + b_ref[...]

    x = x_ref[...]

    # ---- encoder: Linear -> LeakyReLU(0.2) -> Linear -> LeakyReLU(0.2) ----
    h = _leaky_relu(linear(x, we1_ref, be1_ref))
    h = _leaky_relu(linear(h, we2_ref, be2_ref))

    # ---- fused mean / logvar heads: one matmul, one wide output slab ----
    ml = linear(h, wml_ref, bml_ref)       # (tile_b, 2*lp) = [mean | logvar]
    mean = ml[:, :lp]
    logvar = ml[:, lp:]

    # ---- reparameterization: z = mean + exp(0.5 * logvar) * eps (f32, EUP exp) ----
    z = mean + jnp.exp(0.5 * logvar) * eps_ref[...]

    # ---- decoder: Linear -> LeakyReLU -> Linear -> LeakyReLU -> Linear ----
    d = _leaky_relu(linear(z, wd1_ref, bd1_ref))
    d = _leaky_relu(linear(d, wd2_ref, bd2_ref))
    x_hat = linear(d, wd3_ref, bd3_ref)

    xhat_ref[...] = x_hat.astype(xhat_ref.dtype)
    ml_ref[...] = ml.astype(ml_ref.dtype)


def vae_forward(x, eps, params, *, tile_b=None, weight_dtype=jnp.float32):
    """Full VAE forward pass in one Pallas call, batch-tiled with resident weights."""
    f32 = jnp.float32
    B, d_in = x.shape
    hidden = params["w_e1"].shape[1]
    latent = params["w_mu"].shape[1]

    # Lane-pad every feature dim to a multiple of 128.
    d_in_p = _round_up(d_in, 128)
    h_p = _round_up(hidden, 128)
    l_p = _round_up(latent, 128)

    if tile_b is None:
        # Large batch tiles amortize the ~0.35 us/step pipeline overhead and fill the
        # MXU M dimension. ~512 is a good default at these feature sizes on v5e/v6e;
        # pass tile_b=256 on v7x (half the VMEM) if the batch is large.
        tile_b = min(512, _round_up(B, 8))
    b_p = _round_up(B, tile_b)

    def pad2(a, rows, cols):
        a = a.astype(f32)
        return jnp.pad(a, ((0, rows - a.shape[0]), (0, cols - a.shape[1])))

    x_p = pad2(x, b_p, d_in_p)
    eps_p = pad2(eps, b_p, l_p)

    # Weights: (in, out), zero-padded; biases kept (1, out_pad) in f32.
    w_e1 = pad2(params["w_e1"], d_in_p, h_p).astype(weight_dtype)
    b_e1 = pad2(params["b_e1"], 1, h_p)
    w_e2 = pad2(params["w_e2"], h_p, l_p).astype(weight_dtype)
    b_e2 = pad2(params["b_e2"], 1, l_p)
    # Fused mean/logvar head: (l_p, 2*l_p) weight, (1, 2*l_p) bias.
    w_ml = jnp.concatenate(
        [pad2(params["w_mu"], l_p, l_p), pad2(params["w_lv"], l_p, l_p)], axis=1
    ).astype(weight_dtype)
    b_ml = jnp.concatenate(
        [pad2(params["b_mu"], 1, l_p), pad2(params["b_lv"], 1, l_p)], axis=1
    )
    w_d1 = pad2(params["w_d1"], l_p, l_p).astype(weight_dtype)
    b_d1 = pad2(params["b_d1"], 1, l_p)
    w_d2 = pad2(params["w_d2"], l_p, h_p).astype(weight_dtype)
    b_d2 = pad2(params["b_d2"], 1, h_p)
    w_d3 = pad2(params["w_d3"], h_p, d_in_p).astype(weight_dtype)
    b_d3 = pad2(params["b_d3"], 1, d_in_p)

    weights = (w_e1, b_e1, w_e2, b_e2, w_ml, b_ml,
               w_d1, b_d1, w_d2, b_d2, w_d3, b_d3)

    grid = (b_p // tile_b,)

    def batch_spec(cols):
        return pl.BlockSpec((tile_b, cols), lambda i: (i, 0))

    def resident_spec(shape):
        # Constant block index -> stays VMEM-resident across all grid steps.
        return pl.BlockSpec(shape, lambda i: (0, 0))

    in_specs = [batch_spec(d_in_p), batch_spec(l_p)] + [
        resident_spec(w.shape) for w in weights
    ]
    out_specs = (batch_spec(d_in_p), batch_spec(2 * l_p))
    out_shapes = (
        jax.ShapeDtypeStruct((b_p, d_in_p), f32),   # x_hat (padded)
        jax.ShapeDtypeStruct((b_p, 2 * l_p), f32),  # [mean | logvar] slab (padded)
    )

    x_hat_p, ml_p = pl.pallas_call(
        vae_kernel,
        grid=grid,
        in_specs=in_specs,
        out_specs=out_specs,
        out_shape=out_shapes,
        compiler_params=pltpu.CompilerParams(
            dimension_semantics=("parallel",),          # shard batch tiles across TCs (v7x)
            vmem_limit_bytes=48 * 1024 * 1024,          # stays under v7x's 64 MiB VMEM
        ),
    )(x_p, eps_p, *weights)

    x_hat = x_hat_p[:B, :d_in]
    mean = ml_p[:B, :latent]
    log_var = ml_p[:B, l_p:l_p + latent]
    return x_hat, mean, log_var


def init_params(key, input_dim, hidden_dim, latent_dim):
    """Deterministic synthetic parameters; weights are (in_features, out_features)."""
    keys = jax.random.split(key, 8)

    def linear(k, fan_in, fan_out):
        kw, kb = jax.random.split(k)
        bound = 1.0 / jnp.sqrt(fan_in)
        w = jax.random.uniform(kw, (fan_in, fan_out), jnp.float32, -bound, bound)
        b = jax.random.uniform(kb, (1, fan_out), jnp.float32, -bound, bound)
        return w, b

    p = {}
    p["w_e1"], p["b_e1"] = linear(keys[0], input_dim, hidden_dim)
    p["w_e2"], p["b_e2"] = linear(keys[1], hidden_dim, latent_dim)
    p["w_mu"], p["b_mu"] = linear(keys[2], latent_dim, latent_dim)
    p["w_lv"], p["b_lv"] = linear(keys[3], latent_dim, latent_dim)
    p["w_d1"], p["b_d1"] = linear(keys[4], latent_dim, latent_dim)
    p["w_d2"], p["b_d2"] = linear(keys[5], latent_dim, hidden_dim)
    p["w_d3"], p["b_d3"] = linear(keys[6], hidden_dim, input_dim)
    return p


def vae_forward_ref(x, eps, p):
    """Pure-JAX reference for correctness checking."""
    def leaky(v):
        return jnp.where(v > 0, v, 0.2 * v)

    h = leaky(x @ p["w_e1"] + p["b_e1"])
    h = leaky(h @ p["w_e2"] + p["b_e2"])
    mean = h @ p["w_mu"] + p["b_mu"]
    logvar = h @ p["w_lv"] + p["b_lv"]
    z = mean + jnp.exp(0.5 * logvar) * eps
    d = leaky(z @ p["w_d1"] + p["b_d1"])
    d = leaky(d @ p["w_d2"] + p["b_d2"])
    x_hat = d @ p["w_d3"] + p["b_d3"]
    return x_hat, mean, logvar


if __name__ == "__main__":
    # Small shapes consistent with the module defaults: batch=8, input_dim=32,
    # hidden_dim=100, latent_dim=10 (all lane-padded to 128 inside the wrapper).
    B, INPUT_DIM, HIDDEN_DIM, LATENT_DIM = 8, 32, 100, 10

    key = jax.random.PRNGKey(0)
    k_x, k_eps, k_params = jax.random.split(key, 3)

    x = jax.random.normal(k_x, (B, INPUT_DIM), dtype=jnp.float32)
    # Noise for the reparameterization trick (deterministic; sampled outside the kernel).
    eps = jax.random.normal(k_eps, (B, LATENT_DIM), dtype=jnp.float32)

    params = init_params(k_params, INPUT_DIM, HIDDEN_DIM, LATENT_DIM)

    # weight_dtype=jnp.bfloat16 is recommended on v6e/v7x; kept f32 here so the
    # correctness check against the f32 reference is tight.
    x_hat, mean, log_var = vae_forward(x, eps, params, weight_dtype=jnp.float32)
    jax.block_until_ready((x_hat, mean, log_var))

    # Sanity check against the pure-JAX reference.
    x_hat_r, mean_r, log_var_r = vae_forward_ref(x, eps, params)
    assert jnp.allclose(x_hat, x_hat_r, atol=1e-4, rtol=1e-4), "x_hat mismatch"
    assert jnp.allclose(mean, mean_r, atol=1e-4, rtol=1e-4), "mean mismatch"
    assert jnp.allclose(log_var, log_var_r, atol=1e-4, rtol=1e-4), "log_var mismatch"

    print("KERNEL_OK")
</pallas_src>

<mosaic_0001>
module attributes {stable_mosaic.version = 11 : i64} {
  func.func @vae_kernel(%arg0: i32, %arg1: memref<8x128xf32, #tpu.memory_space<vmem>>, %arg2: memref<8x128xf32, #tpu.memory_space<vmem>>, %arg3: memref<128x128xf32, #tpu.memory_space<vmem>>, %arg4: memref<1x128xf32, #tpu.memory_space<vmem>>, %arg5: memref<128x128xf32, #tpu.memory_space<vmem>>, %arg6: memref<1x128xf32, #tpu.memory_space<vmem>>, %arg7: memref<128x256xf32, #tpu.memory_space<vmem>>, %arg8: memref<1x256xf32, #tpu.memory_space<vmem>>, %arg9: memref<128x128xf32, #tpu.memory_space<vmem>>, %arg10: memref<1x128xf32, #tpu.memory_space<vmem>>, %arg11: memref<128x128xf32, #tpu.memory_space<vmem>>, %arg12: memref<1x128xf32, #tpu.memory_space<vmem>>, %arg13: memref<128x128xf32, #tpu.memory_space<vmem>>, %arg14: memref<1x128xf32, #tpu.memory_space<vmem>>, %arg15: memref<8x128xf32, #tpu.memory_space<vmem>>, %arg16: memref<8x256xf32, #tpu.memory_space<vmem>>) attributes {dimension_semantics = [#tpu.dimension_semantics<parallel>], iteration_bounds = array<i64: 1>, scalar_prefetch = 0 : i64, scratch_operands = 0 : i64, tpu.core_type = #tpu.core_type<tc>, window_params = [{transform_indices = @transform_0, window_bounds = array<i64: 8, 128>}, {transform_indices = @transform_1, window_bounds = array<i64: 8, 128>}, {pipeline_mode = #tpu.pipeline_mode<synchronous>, transform_indices = @transform_2, window_bounds = array<i64: 128, 128>}, {pipeline_mode = #tpu.pipeline_mode<synchronous>, transform_indices = @transform_3, window_bounds = array<i64: 1, 128>}, {pipeline_mode = #tpu.pipeline_mode<synchronous>, transform_indices = @transform_4, window_bounds = array<i64: 128, 128>}, {pipeline_mode = #tpu.pipeline_mode<synchronous>, transform_indices = @transform_5, window_bounds = array<i64: 1, 128>}, {pipeline_mode = #tpu.pipeline_mode<synchronous>, transform_indices = @transform_6, window_bounds = array<i64: 128, 256>}, {pipeline_mode = #tpu.pipeline_mode<synchronous>, transform_indices = @transform_7, window_bounds = array<i64: 1, 256>}, {pipeline_mode = #tpu.pipeline_mode<synchronous>, transform_indices = @transform_8, window_bounds = array<i64: 128, 128>}, {pipeline_mode = #tpu.pipeline_mode<synchronous>, transform_indices = @transform_9, window_bounds = array<i64: 1, 128>}, {pipeline_mode = #tpu.pipeline_mode<synchronous>, transform_indices = @transform_10, window_bounds = array<i64: 128, 128>}, {pipeline_mode = #tpu.pipeline_mode<synchronous>, transform_indices = @transform_11, window_bounds = array<i64: 1, 128>}, {pipeline_mode = #tpu.pipeline_mode<synchronous>, transform_indices = @transform_12, window_bounds = array<i64: 128, 128>}, {pipeline_mode = #tpu.pipeline_mode<synchronous>, transform_indices = @transform_13, window_bounds = array<i64: 1, 128>}, {transform_indices = @transform_14, window_bounds = array<i64: 8, 128>}, {transform_indices = @transform_15, window_bounds = array<i64: 8, 256>}]} {
    %c0 = arith.constant 0 : index
    %c0_0 = arith.constant 0 : index
    %0 = vector.load %arg1[%c0, %c0_0] : memref<8x128xf32, #tpu.memory_space<vmem>>, vector<8x128xf32>
    %c0_1 = arith.constant 0 : index
    %c0_2 = arith.constant 0 : index
    %1 = vector.load %arg3[%c0_1, %c0_2] : memref<128x128xf32, #tpu.memory_space<vmem>>, vector<128x128xf32>
    %cst = arith.constant dense<0.000000e+00> : vector<8x128xf32>
    %2 = tpu.matmul %0, %1, %cst {dimension_numbers = #tpu.dot_dimension_numbers<[1], [0], [0], [1], [0, 0, 1, 1], [], []>} : vector<8x128xf32>, vector<128x128xf32>, vector<8x128xf32> -> vector<8x128xf32>
    %c0_3 = arith.constant 0 : index
    %c0_4 = arith.constant 0 : index
    %3 = vector.load %arg4[%c0_3, %c0_4] : memref<1x128xf32, #tpu.memory_space<vmem>>, vector<1x128xf32>
    %4 = vector.broadcast %3 : vector<1x128xf32> to vector<8x128xf32>
    %5 = arith.addf %2, %4 : vector<8x128xf32>
    %cst_5 = arith.constant 0.000000e+00 : f32
    %6 = vector.broadcast %cst_5 : f32 to vector<8x128xf32>
    %7 = arith.cmpf ogt, %5, %6 : vector<8x128xf32>
    %cst_6 = arith.constant 2.000000e-01 : f32
    %8 = vector.broadcast %cst_6 : f32 to vector<8x128xf32>
    %9 = arith.mulf %8, %5 : vector<8x128xf32>
    %10 = arith.select %7, %5, %9 : vector<8x128xi1>, vector<8x128xf32>
    %c0_7 = arith.constant 0 : index
    %c0_8 = arith.constant 0 : index
    %11 = vector.load %arg5[%c0_7, %c0_8] : memref<128x128xf32, #tpu.memory_space<vmem>>, vector<128x128xf32>
    %cst_9 = arith.constant dense<0.000000e+00> : vector<8x128xf32>
    %12 = tpu.matmul %10, %11, %cst_9 {dimension_numbers = #tpu.dot_dimension_numbers<[1], [0], [0], [1], [0, 0, 1, 1], [], []>} : vector<8x128xf32>, vector<128x128xf32>, vector<8x128xf32> -> vector<8x128xf32>
    %c0_10 = arith.constant 0 : index
    %c0_11 = arith.constant 0 : index
    %13 = vector.load %arg6[%c0_10, %c0_11] : memref<1x128xf32, #tpu.memory_space<vmem>>, vector<1x128xf32>
    %14 = vector.broadcast %13 : vector<1x128xf32> to vector<8x128xf32>
    %15 = arith.addf %12, %14 : vector<8x128xf32>
    %cst_12 = arith.constant 0.000000e+00 : f32
    %16 = vector.broadcast %cst_12 : f32 to vector<8x128xf32>
    %17 = arith.cmpf ogt, %15, %16 : vector<8x128xf32>
    %cst_13 = arith.constant 2.000000e-01 : f32
    %18 = vector.broadcast %cst_13 : f32 to vector<8x128xf32>
    %19 = arith.mulf %18, %15 : vector<8x128xf32>
    %20 = arith.select %17, %15, %19 : vector<8x128xi1>, vector<8x128xf32>
    %c0_14 = arith.constant 0 : index
    %c0_15 = arith.constant 0 : index
    %21 = vector.load %arg7[%c0_14, %c0_15] : memref<128x256xf32, #tpu.memory_space<vmem>>, vector<128x256xf32>
    %cst_16 = arith.constant dense<0.000000e+00> : vector<8x256xf32>
    %22 = tpu.matmul %20, %21, %cst_16 {dimension_numbers = #tpu.dot_dimension_numbers<[1], [0], [0], [1], [0, 0, 1, 1], [], []>} : vector<8x128xf32>, vector<128x256xf32>, vector<8x256xf32> -> vector<8x256xf32>
    %c0_17 = arith.constant 0 : index
    %c0_18 = arith.constant 0 : index
    %23 = vector.load %arg8[%c0_17, %c0_18] : memref<1x256xf32, #tpu.memory_space<vmem>>, vector<1x256xf32>
    %24 = vector.broadcast %23 : vector<1x256xf32> to vector<8x256xf32>
    %25 = arith.addf %22, %24 : vector<8x256xf32>
    %26 = vector.extract_strided_slice %25 {offsets = [0, 0], sizes = [8, 128], strides = [1, 1]} : vector<8x256xf32> to vector<8x128xf32>
    %27 = vector.extract_strided_slice %25 {offsets = [0, 128], sizes = [8, 128], strides = [1, 1]} : vector<8x256xf32> to vector<8x128xf32>
    %cst_19 = arith.constant 5.000000e-01 : f32
    %28 = vector.broadcast %cst_19 : f32 to vector<8x128xf32>
    %29 = arith.mulf %28, %27 : vector<8x128xf32>
    %30 = math.exp %29 : vector<8x128xf32>
    %c0_20 = arith.constant 0 : index
    %c0_21 = arith.constant 0 : index
    %31 = vector.load %arg2[%c0_20, %c0_21] : memref<8x128xf32, #tpu.memory_space<vmem>>, vector<8x128xf32>
    %32 = arith.mulf %30, %31 : vector<8x128xf32>
    %33 = arith.addf %26, %32 : vector<8x128xf32>
    %c0_22 = arith.constant 0 : index
    %c0_23 = arith.constant 0 : index
    %34 = vector.load %arg9[%c0_22, %c0_23] : memref<128x128xf32, #tpu.memory_space<vmem>>, vector<128x128xf32>
    %cst_24 = arith.constant dense<0.000000e+00> : vector<8x128xf32>
    %35 = tpu.matmul %33, %34, %cst_24 {dimension_numbers = #tpu.dot_dimension_numbers<[1], [0], [0], [1], [0, 0, 1, 1], [], []>} : vector<8x128xf32>, vector<128x128xf32>, vector<8x128xf32> -> vector<8x128xf32>
    %c0_25 = arith.constant 0 : index
    %c0_26 = arith.constant 0 : index
    %36 = vector.load %arg10[%c0_25, %c0_26] : memref<1x128xf32, #tpu.memory_space<vmem>>, vector<1x128xf32>
    %37 = vector.broadcast %36 : vector<1x128xf32> to vector<8x128xf32>
    %38 = arith.addf %35, %37 : vector<8x128xf32>
    %cst_27 = arith.constant 0.000000e+00 : f32
    %39 = vector.broadcast %cst_27 : f32 to vector<8x128xf32>
    %40 = arith.cmpf ogt, %38, %39 : vector<8x128xf32>
    %cst_28 = arith.constant 2.000000e-01 : f32
    %41 = vector.broadcast %cst_28 : f32 to vector<8x128xf32>
    %42 = arith.mulf %41, %38 : vector<8x128xf32>
    %43 = arith.select %40, %38, %42 : vector<8x128xi1>, vector<8x128xf32>
    %c0_29 = arith.constant 0 : index
    %c0_30 = arith.constant 0 : index
    %44 = vector.load %arg11[%c0_29, %c0_30] : memref<128x128xf32, #tpu.memory_space<vmem>>, vector<128x128xf32>
    %cst_31 = arith.constant dense<0.000000e+00> : vector<8x128xf32>
    %45 = tpu.matmul %43, %44, %cst_31 {dimension_numbers = #tpu.dot_dimension_numbers<[1], [0], [0], [1], [0, 0, 1, 1], [], []>} : vector<8x128xf32>, vector<128x128xf32>, vector<8x128xf32> -> vector<8x128xf32>
    %c0_32 = arith.constant 0 : index
    %c0_33 = arith.constant 0 : index
    %46 = vector.load %arg12[%c0_32, %c0_33] : memref<1x128xf32, #tpu.memory_space<vmem>>, vector<1x128xf32>
    %47 = vector.broadcast %46 : vector<1x128xf32> to vector<8x128xf32>
    %48 = arith.addf %45, %47 : vector<8x128xf32>
    %cst_34 = arith.constant 0.000000e+00 : f32
    %49 = vector.broadcast %cst_34 : f32 to vector<8x128xf32>
    %50 = arith.cmpf ogt, %48, %49 : vector<8x128xf32>
    %cst_35 = arith.constant 2.000000e-01 : f32
    %51 = vector.broadcast %cst_35 : f32 to vector<8x128xf32>
    %52 = arith.mulf %51, %48 : vector<8x128xf32>
    %53 = arith.select %50, %48, %52 : vector<8x128xi1>, vector<8x128xf32>
    %c0_36 = arith.constant 0 : index
    %c0_37 = arith.constant 0 : index
    %54 = vector.load %arg13[%c0_36, %c0_37] : memref<128x128xf32, #tpu.memory_space<vmem>>, vector<128x128xf32>
    %cst_38 = arith.constant dense<0.000000e+00> : vector<8x128xf32>
    %55 = tpu.matmul %53, %54, %cst_38 {dimension_numbers = #tpu.dot_dimension_numbers<[1], [0], [0], [1], [0, 0, 1, 1], [], []>} : vector<8x128xf32>, vector<128x128xf32>, vector<8x128xf32> -> vector<8x128xf32>
    %c0_39 = arith.constant 0 : index
    %c0_40 = arith.constant 0 : index
    %56 = vector.load %arg14[%c0_39, %c0_40] : memref<1x128xf32, #tpu.memory_space<vmem>>, vector<1x128xf32>
    %57 = vector.broadcast %56 : vector<1x128xf32> to vector<8x128xf32>
    %58 = arith.addf %55, %57 : vector<8x128xf32>
    %c0_41 = arith.constant 0 : index
    %c0_42 = arith.constant 0 : index
    %59 = vector.load %arg15[%c0_41, %c0_42] : memref<8x128xf32, #tpu.memory_space<vmem>>, vector<8x128xf32>
    tpu.vector_store %arg15[%c0_41, %c0_42], %58 {strides = array<i32>} : memref<8x128xf32, #tpu.memory_space<vmem>>, vector<8x128xf32>,
    %c0_43 = arith.constant 0 : index
    %c0_44 = arith.constant 0 : index
    %60 = vector.load %arg16[%c0_43, %c0_44] : memref<8x256xf32, #tpu.memory_space<vmem>>, vector<8x256xf32>
    tpu.vector_store %arg16[%c0_43, %c0_44], %25 {strides = array<i32>} : memref<8x256xf32, #tpu.memory_space<vmem>>, vector<8x256xf32>,
    return
  }
  func.func @transform_0(%arg0: i32) -> (i32, i32) {
    %c0_i32 = arith.constant 0 : i32
    %c0_i32_0 = arith.constant 0 : i32
    return %arg0, %c0_i32 : i32, i32
  }
  func.func @transform_1(%arg0: i32) -> (i32, i32) {
    %c0_i32 = arith.constant 0 : i32
    %c0_i32_0 = arith.constant 0 : i32
    return %arg0, %c0_i32 : i32, i32
  }
  func.func @transform_2(%arg0: i32) -> (i32, i32) {
    %c0_i32 = arith.constant 0 : i32
    %c0_i32_0 = arith.constant 0 : i32
    %c0_i32_1 = arith.constant 0 : i32
    return %c0_i32, %c0_i32_0 : i32, i32
  }
  func.func @transform_3(%arg0: i32) -> (i32, i32) {
    %c0_i32 = arith.constant 0 : i32
    %c0_i32_0 = arith.constant 0 : i32
    %c0_i32_1 = arith.constant 0 : i32
    return %c0_i32, %c0_i32_0 : i32, i32
  }
  func.func @transform_4(%arg0: i32) -> (i32, i32) {
    %c0_i32 = arith.constant 0 : i32
    %c0_i32_0 = arith.constant 0 : i32
    %c0_i32_1 = arith.constant 0 : i32
    return %c0_i32, %c0_i32_0 : i32, i32
  }
  func.func @transform_5(%arg0: i32) -> (i32, i32) {
    %c0_i32 = arith.constant 0 : i32
    %c0_i32_0 = arith.constant 0 : i32
    %c0_i32_1 = arith.constant 0 : i32
    return %c0_i32, %c0_i32_0 : i32, i32
  }
  func.func @transform_6(%arg0: i32) -> (i32, i32) {
    %c0_i32 = arith.constant 0 : i32
    %c0_i32_0 = arith.constant 0 : i32
    %c0_i32_1 = arith.constant 0 : i32
    return %c0_i32, %c0_i32_0 : i32, i32
  }
  func.func @transform_7(%arg0: i32) -> (i32, i32) {
    %c0_i32 = arith.constant 0 : i32
    %c0_i32_0 = arith.constant 0 : i32
    %c0_i32_1 = arith.constant 0 : i32
    return %c0_i32, %c0_i32_0 : i32, i32
  }
  func.func @transform_8(%arg0: i32) -> (i32, i32) {
    %c0_i32 = arith.constant 0 : i32
    %c0_i32_0 = arith.constant 0 : i32
    %c0_i32_1 = arith.constant 0 : i32
    return %c0_i32, %c0_i32_0 : i32, i32
  }
  func.func @transform_9(%arg0: i32) -> (i32, i32) {
    %c0_i32 = arith.constant 0 : i32
    %c0_i32_0 = arith.constant 0 : i32
    %c0_i32_1 = arith.constant 0 : i32
    return %c0_i32, %c0_i32_0 : i32, i32
  }
  func.func @transform_10(%arg0: i32) -> (i32, i32) {
    %c0_i32 = arith.constant 0 : i32
    %c0_i32_0 = arith.constant 0 : i32
    %c0_i32_1 = arith.constant 0 : i32
    return %c0_i32, %c0_i32_0 : i32, i32
  }
  func.func @transform_11(%arg0: i32) -> (i32, i32) {
    %c0_i32 = arith.constant 0 : i32
    %c0_i32_0 = arith.constant 0 : i32
    %c0_i32_1 = arith.constant 0 : i32
    return %c0_i32, %c0_i32_0 : i32, i32
  }
  func.func @transform_12(%arg0: i32) -> (i32, i32) {
    %c0_i32 = arith.constant 0 : i32
    %c0_i32_0 = arith.constant 0 : i32
    %c0_i32_1 = arith.constant 0 : i32
    return %c0_i32, %c0_i32_0 : i32, i32
  }
  func.func @transform_13(%arg0: i32) -> (i32, i32) {
    %c0_i32 = arith.constant 0 : i32
    %c0_i32_0 = arith.constant 0 : i32
    %c0_i32_1 = arith.constant 0 : i32
    return %c0_i32, %c0_i32_0 : i32, i32
  }
  func.func @transform_14(%arg0: i32) -> (i32, i32) {
    %c0_i32 = arith.constant 0 : i32
    %c0_i32_0 = arith.constant 0 : i32
    return %arg0, %c0_i32 : i32, i32
  }
  func.func @transform_15(%arg0: i32) -> (i32, i32) {
    %c0_i32 = arith.constant 0 : i32
    %c0_i32_0 = arith.constant 0 : i32
    return %arg0, %c0_i32 : i32, i32
  }
}

</mosaic_0001>

<llo_original>
// kernel: tpu_custom_call.1
$region0: #{tpu_custom_call.1}
  #allocation0 [shape = 'u32[]', space=smem, size = 0x4, offset = 0x4, fixed_abs, tag = 'smem constant byte address 0x4 - core index']
  #allocation1 [shape = 'u32[144,128]{1,0:T(1,128)}', space=vmem, size = 0x12000, scoped, tag = 'internal scratch']
  %s0 = inlined_call_operand.hbm [shape: f32[8,128], index: 0, kind: input, shape index: {}]
  %s1 = inlined_call_operand.hbm [shape: f32[8,128], index: 1, kind: input, shape index: {}]
  %s2 = inlined_call_operand.hbm [shape: f32[128,128], index: 2, kind: input, shape index: {}]
  %s3 = inlined_call_operand.vmem [shape: f32[1,128], index: 3, kind: input, shape index: {}]
  %s4 = inlined_call_operand.hbm [shape: f32[128,128], index: 4, kind: input, shape index: {}]
  %s5 = inlined_call_operand.vmem [shape: f32[1,128], index: 5, kind: input, shape index: {}]
  %s6 = inlined_call_operand.hbm [shape: f32[128,256], index: 6, kind: input, shape index: {}]
  %s7 = inlined_call_operand.vmem [shape: f32[1,256], index: 7, kind: input, shape index: {}]
  %s8 = inlined_call_operand.hbm [shape: f32[128,128], index: 8, kind: input, shape index: {}]
  %s9 = inlined_call_operand.vmem [shape: f32[1,128], index: 9, kind: input, shape index: {}]
  %s10 = inlined_call_operand.hbm [shape: f32[128,128], index: 10, kind: input, shape index: {}]
  %s11 = inlined_call_operand.vmem [shape: f32[1,128], index: 11, kind: input, shape index: {}]
  %s12 = inlined_call_operand.hbm [shape: f32[128,128], index: 12, kind: input, shape index: {}]
  %s13 = inlined_call_operand.vmem [shape: f32[1,128], index: 13, kind: input, shape index: {}]
  %s14 = inlined_call_operand.hbm [shape: f32[8,128], index: 14, kind: output, shape index: {0}]
  %s15 = inlined_call_operand.hbm [shape: f32[8,256], index: 15, kind: output, shape index: {1}]
  %16 = xla_tuple %s14, %s15
  %s17 = sld [smem:[#allocation0]]
  $region106: #{tpu_custom_call.1} parent=0
    _
  %s19 = ssub.s32 1, %s17
  %s20 = scalar_select 0, %s19, %s17
  $region1: #{tpu_custom_call.1} parent=0
    #allocation2 [shape = 'u8[4096]{0}', space=vmem, size = 0x1000, scoped, tag = 'input window, operand 0, single buffered']
    #allocation3 [shape = 's32[1]{0}', space=sflag, size = 0x4, scoped, tag = 'scoped memory for tpu_custom_call.1']
    #allocation4 [shape = 's32[1]{0}', space=sflag, size = 0x4, scoped, tag = 'scoped memory for tpu_custom_call.1']
    #allocation5 [shape = 'u8[4096]{0}', space=vmem, size = 0x1000, scoped, tag = 'input window, operand 1, single buffered']
    #allocation6 [shape = 's32[1]{0}', space=sflag, size = 0x4, scoped, tag = 'scoped memory for tpu_custom_call.1']
    #allocation7 [shape = 'u8[65536]{0}', space=vmem, size = 0x10000, scoped, tag = 'input window, operand 2, single buffered']
    #allocation8 [shape = 'u8[65536]{0}', space=vmem, size = 0x10000, scoped, tag = 'input window, operand 4, single buffered']
    #allocation9 [shape = 's32[1]{0}', space=sflag, size = 0x4, scoped, tag = 'scoped memory for tpu_custom_call.1']
    #allocation10 [shape = 'u8[131072]{0}', space=vmem, size = 0x20000, scoped, tag = 'input window, operand 6, single buffered']
    #allocation11 [shape = 'u8[65536]{0}', space=vmem, size = 0x10000, scoped, tag = 'input window, operand 8, single buffered']
    #allocation12 [shape = 's32[1]{0}', space=sflag, size = 0x4, scoped, tag = 'scoped memory for tpu_custom_call.1']
    #allocation13 [shape = 'u8[65536]{0}', space=vmem, size = 0x10000, scoped, tag = 'input window, operand 10, single buffered']
    #allocation14 [shape = 'u8[65536]{0}', space=vmem, size = 0x10000, scoped, tag = 'input window, operand 12, single buffered']
    #allocation15 [shape = 's32[1]{0}', space=sflag, size = 0x4, scoped, tag = 'scoped memory for tpu_custom_call.1']
    #allocation16 [shape = 'u8[4096]{0}', space=vmem, size = 0x1000, scoped, tag = 'output window, operand 0, single buffered']
    #allocation17 [shape = 'u8[8192]{0}', space=vmem, size = 0x2000, scoped, tag = 'output window, operand 1, single buffered']
    #allocation18 [shape = 's32[1]{0}', space=sflag, size = 0x4, scoped, tag = 'scoped memory for tpu_custom_call.1']
    %21 = vsyncpa [#allocation3], 0
    %22 = vsyncpa [#allocation6], 0
    %23 = vsyncpa [#allocation9], 0
    %24 = vsyncpa [#allocation12], 0
    %25 = vsyncpa [#allocation15], 0
    %26 = vsyncpa [#allocation4], 0
    %27 = vsyncpa [#allocation18], 0
    // Predicated region
    $region2: #{tpu_custom_call.1} parent=1 // pred_check
      _
    $region3: #{tpu_custom_call.1} parent=1 // pred_check_branch
      %29 = sbr.rel (0) target = $region5
    $region4: #{tpu_custom_call.1} parent=1 // pred_region
      %s31 = ssub.s32 128, 128
      %32 = vsyncadd [#allocation3], %s31
      %s34 = sshll.u32 [#allocation2], 4
      %s35 = int_to_ptr.vmem [resolvable:$true] %s34
      %37 = dma.hbm_to_vmem [thread:$0]  %s0, 128, %s35, [#allocation3]
    $region5: #{tpu_custom_call.1} parent=1 // pred_fallthru
      _
    // Predicated region
    $region6: #{tpu_custom_call.1} parent=1 // pred_check
      _
    $region7: #{tpu_custom_call.1} parent=1 // pred_check_branch
      %39 = sbr.rel (0) target = $region9
    $region8: #{tpu_custom_call.1} parent=1 // pred_region
      %s41 = ssub.s32 128, 128
      %42 = vsyncadd [#allocation6], %s41
      %s44 = sshll.u32 [#allocation5], 4
      %s45 = int_to_ptr.vmem [resolvable:$true] %s44
      %47 = dma.hbm_to_vmem [thread:$0]  %s1, 128, %s45, [#allocation6]
    $region9: #{tpu_custom_call.1} parent=1 // pred_fallthru
      _
    // Predicated region
    $region10: #{tpu_custom_call.1} parent=1 // pred_check
      _
    $region11: #{tpu_custom_call.1} parent=1 // pred_check_branch
      %49 = sbr.rel (0) target = $region13
    $region12: #{tpu_custom_call.1} parent=1 // pred_region
      %s51 = ssub.s32 2048, 2048
      %52 = vsyncadd [#allocation6], %s51
      %s53 = sshll.u32 [#allocation7], 4
      %s54 = int_to_ptr.vmem [resolvable:$true] %s53
      %59 = dma.hbm_to_vmem [thread:$0]  %s2, 2048, %s54, [#allocation6], 128, 128, 8
    $region13: #{tpu_custom_call.1} parent=1 // pred_fallthru
      _
    // Predicated region
    $region14: #{tpu_custom_call.1} parent=1 // pred_check
      _
    $region15: #{tpu_custom_call.1} parent=1 // pred_check_branch
      %61 = sbr.rel (0) target = $region17
    $region16: #{tpu_custom_call.1} parent=1 // pred_region
      _
    $region17: #{tpu_custom_call.1} parent=1 // pred_fallthru
      _
    // Predicated region
    $region18: #{tpu_custom_call.1} parent=1 // pred_check
      _
    $region19: #{tpu_custom_call.1} parent=1 // pred_check_branch
      %63 = sbr.rel (0) target = $region21
    $region20: #{tpu_custom_call.1} parent=1 // pred_region
      %s65 = ssub.s32 2048, 2048
      %66 = vsyncadd [#allocation9], %s65
      %s67 = sshll.u32 [#allocation8], 4
      %s68 = int_to_ptr.vmem [resolvable:$true] %s67
      %73 = dma.hbm_to_vmem [thread:$0]  %s4, 2048, %s68, [#allocation9], 128, 128, 8
    $region21: #{tpu_custom_call.1} parent=1 // pred_fallthru
      _
    // Predicated region
    $region22: #{tpu_custom_call.1} parent=1 // pred_check
      _
    $region23: #{tpu_custom_call.1} parent=1 // pred_check_branch
      %75 = sbr.rel (0) target = $region25
    $region24: #{tpu_custom_call.1} parent=1 // pred_region
      _
    $region25: #{tpu_custom_call.1} parent=1 // pred_fallthru
      _
    // Predicated region
    $region26: #{tpu_custom_call.1} parent=1 // pred_check
      _
    $region27: #{tpu_custom_call.1} parent=1 // pred_check_branch
      %77 = sbr.rel (0) target = $region29
    $region28: #{tpu_custom_call.1} parent=1 // pred_region
      %s79 = ssub.s32 4096, 4096
      %80 = vsyncadd [#allocation9], %s79
      %s81 = sshll.u32 [#allocation10], 4
      %s82 = int_to_ptr.vmem [resolvable:$true] %s81
      %87 = dma.hbm_to_vmem [thread:$0]  %s6, 4096, %s82, [#allocation9], 256, 256, 16
    $region29: #{tpu_custom_call.1} parent=1 // pred_fallthru
      _
    // Predicated region
    $region30: #{tpu_custom_call.1} parent=1 // pred_check
      _
    $region31: #{tpu_custom_call.1} parent=1 // pred_check_branch
      %89 = sbr.rel (0) target = $region33
    $region32: #{tpu_custom_call.1} parent=1 // pred_region
      _
    $region33: #{tpu_custom_call.1} parent=1 // pred_fallthru
      _
    // Predicated region
    $region34: #{tpu_custom_call.1} parent=1 // pred_check
      _
    $region35: #{tpu_custom_call.1} parent=1 // pred_check_branch
      %91 = sbr.rel (0) target = $region37
    $region36: #{tpu_custom_call.1} parent=1 // pred_region
      %s93 = ssub.s32 2048, 2048
      %94 = vsyncadd [#allocation12], %s93
      %s95 = sshll.u32 [#allocation11], 4
      %s96 = int_to_ptr.vmem [resolvable:$true] %s95
      %101 = dma.hbm_to_vmem [thread:$0]  %s8, 2048, %s96, [#allocation12], 128, 128, 8
    $region37: #{tpu_custom_call.1} parent=1 // pred_fallthru
      _
    // Predicated region
    $region38: #{tpu_custom_call.1} parent=1 // pred_check
      _
    $region39: #{tpu_custom_call.1} parent=1 // pred_check_branch
      %103 = sbr.rel (0) target = $region41
    $region40: #{tpu_custom_call.1} parent=1 // pred_region
      _
    $region41: #{tpu_custom_call.1} parent=1 // pred_fallthru
      _
    // Predicated region
    $region42: #{tpu_custom_call.1} parent=1 // pred_check
      _
    $region43: #{tpu_custom_call.1} parent=1 // pred_check_branch
      %105 = sbr.rel (0) target = $region45
    $region44: #{tpu_custom_call.1} parent=1 // pred_region
      %s107 = ssub.s32 2048, 2048
      %108 = vsyncadd [#allocation12], %s107
      %s109 = sshll.u32 [#allocation13], 4
      %s110 = int_to_ptr.vmem [resolvable:$true] %s109
      %115 = dma.hbm_to_vmem [thread:$0]  %s10, 2048, %s110, [#allocation12], 128, 128, 8
    $region45: #{tpu_custom_call.1} parent=1 // pred_fallthru
      _
    // Predicated region
    $region46: #{tpu_custom_call.1} parent=1 // pred_check
      _
    $region47: #{tpu_custom_call.1} parent=1 // pred_check_branch
      %117 = sbr.rel (0) target = $region49
    $region48: #{tpu_custom_call.1} parent=1 // pred_region
      _
    $region49: #{tpu_custom_call.1} parent=1 // pred_fallthru
      _
    // Predicated region
    $region50: #{tpu_custom_call.1} parent=1 // pred_check
      _
    $region51: #{tpu_custom_call.1} parent=1 // pred_check_branch
      %119 = sbr.rel (0) target = $region53
    $region52: #{tpu_custom_call.1} parent=1 // pred_region
      %s121 = ssub.s32 2048, 2048
      %122 = vsyncadd [#allocation15], %s121
      %s123 = sshll.u32 [#allocation14], 4
      %s124 = int_to_ptr.vmem [resolvable:$true] %s123
      %129 = dma.hbm_to_vmem [thread:$0]  %s12, 2048, %s124, [#allocation15], 128, 128, 8
    $region53: #{tpu_custom_call.1} parent=1 // pred_fallthru
      _
    // Predicated region
    $region54: #{tpu_custom_call.1} parent=1 // pred_check
      _
    $region55: #{tpu_custom_call.1} parent=1 // pred_check_branch
      %131 = sbr.rel (0) target = $region57
    $region56: #{tpu_custom_call.1} parent=1 // pred_region
      _
    $region57: #{tpu_custom_call.1} parent=1 // pred_fallthru
      _
    // Predicated region
    $region58: #{tpu_custom_call.1} parent=1 // pred_check
      _
    $region59: #{tpu_custom_call.1} parent=1 // pred_check_branch
      %133 = sbr.rel (0) target = $region61
    $region60: #{tpu_custom_call.1} parent=1 // pred_region
      %134 = dma.done [#allocation3], 128
    $region61: #{tpu_custom_call.1} parent=1 // pred_fallthru
      _
    // Predicated region
    $region62: #{tpu_custom_call.1} parent=1 // pred_check
      _
    $region63: #{tpu_custom_call.1} parent=1 // pred_check_branch
      %136 = sbr.rel (0) target = $region65
    $region64: #{tpu_custom_call.1} parent=1 // pred_region
      %137 = dma.done [#allocation6], 128
    $region65: #{tpu_custom_call.1} parent=1 // pred_fallthru
      _
    // Predicated region
    $region66: #{tpu_custom_call.1} parent=1 // pred_check
      _
    $region67: #{tpu_custom_call.1} parent=1 // pred_check_branch
      %139 = sbr.rel (0) target = $region69
    $region68: #{tpu_custom_call.1} parent=1 // pred_region
      %140 = dma.done [#allocation6], 2048
    $region69: #{tpu_custom_call.1} parent=1 // pred_fallthru
      _
    // Predicated region
    $region70: #{tpu_custom_call.1} parent=1 // pred_check
      _
    $region71: #{tpu_custom_call.1} parent=1 // pred_check_branch
      %142 = sbr.rel (0) target = $region73
    $region72: #{tpu_custom_call.1} parent=1 // pred_region
      %143 = dma.done [#allocation9], 2048
    $region73: #{tpu_custom_call.1} parent=1 // pred_fallthru
      _
    // Predicated region
    $region74: #{tpu_custom_call.1} parent=1 // pred_check
      _
    $region75: #{tpu_custom_call.1} parent=1 // pred_check_branch
      %145 = sbr.rel (0) target = $region77
    $region76: #{tpu_custom_call.1} parent=1 // pred_region
      %146 = dma.done [#allocation9], 4096
    $region77: #{tpu_custom_call.1} parent=1 // pred_fallthru
      _
    // Predicated region
    $region78: #{tpu_custom_call.1} parent=1 // pred_check
      _
    $region79: #{tpu_custom_call.1} parent=1 // pred_check_branch
      %148 = sbr.rel (0) target = $region81
    $region80: #{tpu_custom_call.1} parent=1 // pred_region
      %149 = dma.done [#allocation12], 2048
    $region81: #{tpu_custom_call.1} parent=1 // pred_fallthru
      _
    // Predicated region
    $region82: #{tpu_custom_call.1} parent=1 // pred_check
      _
    $region83: #{tpu_custom_call.1} parent=1 // pred_check_branch
      %151 = sbr.rel (0) target = $region85
    $region84: #{tpu_custom_call.1} parent=1 // pred_region
      %152 = dma.done [#allocation12], 2048
    $region85: #{tpu_custom_call.1} parent=1 // pred_fallthru
      _
    // Predicated region
    $region86: #{tpu_custom_call.1} parent=1 // pred_check
      _
    $region87: #{tpu_custom_call.1} parent=1 // pred_check_branch
      %154 = sbr.rel (0) target = $region89
    $region88: #{tpu_custom_call.1} parent=1 // pred_region
      %155 = dma.done [#allocation15], 2048
    $region89: #{tpu_custom_call.1} parent=1 // pred_fallthru
      _
    %v156 = vld [vmem:[#allocation2] sm:$0xff]
    %v157 = vld [vmem:[#allocation7] sm:$0xff]
    %v158 = vld [vmem:[#allocation7 + $0x8] sm:$0xff]
    %v159 = vld [vmem:[#allocation7 + $0x10] sm:$0xff]
    %v160 = vld [vmem:[#allocation7 + $0x18] sm:$0xff]
    %v161 = vld [vmem:[#allocation7 + $0x20] sm:$0xff]
    %v162 = vld [vmem:[#allocation7 + $0x28] sm:$0xff]
    %v163 = vld [vmem:[#allocation7 + $0x30] sm:$0xff]
    %v164 = vld [vmem:[#allocation7 + $0x38] sm:$0xff]
    %v165 = vld [vmem:[#allocation7 + $0x40] sm:$0xff]
    %v166 = vld [vmem:[#allocation7 + $0x48] sm:$0xff]
    %v167 = vld [vmem:[#allocation7 + $0x50] sm:$0xff]
    %v168 = vld [vmem:[#allocation7 + $0x58] sm:$0xff]
    %v169 = vld [vmem:[#allocation7 + $0x60] sm:$0xff]
    %v170 = vld [vmem:[#allocation7 + $0x68] sm:$0xff]
    %v171 = vld [vmem:[#allocation7 + $0x70] sm:$0xff]
    %v172 = vld [vmem:[#allocation7 + $0x78] sm:$0xff]
    %v173 = vld [vmem:[%s3] sm:$0x1]
    %v175 = vlaneseq
    %v176 = vshrl.u32 %v175, 7
    %v177 = vsub.s32 0, %v176
    %v178 = vrot.slane %v173, %v177
    %180 = vmatprep.subr.mxu0 0.0
    %181 = vmatpush1.msra.mxu0 %v157
    %182 = vmatprep.subr.mxu0 0.0
    %183 = vmatpush1.msra.mxu0 %v158
    %184 = vmatprep.subr.mxu0 0.0
    %185 = vmatpush1.msra.mxu0 %v159
    %186 = vmatprep.subr.mxu0 0.0
    %187 = vmatpush1.msra.mxu0 %v160
    %188 = vmatprep.subr.mxu0 0.0
    %189 = vmatpush1.msra.mxu0 %v161
    %190 = vmatprep.subr.mxu0 0.0
    %191 = vmatpush1.msra.mxu0 %v162
    %192 = vmatprep.subr.mxu0 0.0
    %193 = vmatpush1.msra.mxu0 %v163
    %194 = vmatprep.subr.mxu0 0.0
    %195 = vmatpush1.msra.mxu0 %v164
    %196 = vmatprep.subr.mxu0 0.0
    %197 = vmatpush1.msra.mxu0 %v165
    %198 = vmatprep.subr.mxu0 0.0
    %199 = vmatpush1.msra.mxu0 %v166
    %200 = vmatprep.subr.mxu0 0.0
    %201 = vmatpush1.msra.mxu0 %v167
    %202 = vmatprep.subr.mxu0 0.0
    %203 = vmatpush1.msra.mxu0 %v168
    %204 = vmatprep.subr.mxu0 0.0
    %205 = vmatpush1.msra.mxu0 %v169
    %206 = vmatprep.subr.mxu0 0.0
    %207 = vmatpush1.msra.mxu0 %v170
    %208 = vmatprep.subr.mxu0 0.0
    %209 = vmatpush1.msra.mxu0 %v171
    %210 = vmatprep.subr.mxu0 0.0
    %211 = vmatpush1.msra.mxu0 %v172
    %212 = vmatprep.subr.mxu0 0.0
    %213 = vmatpush1.msra.mxu0 0.0
    %214 = vmatprep.subr.mxu0 0.0
    %215 = vmatpush1.msra.mxu0 0.0
    %216 = vmatprep.subr.mxu0 0.0
    %217 = vmatpush1.msra.mxu0 0.0
    %218 = vmatprep.subr.mxu0 0.0
    %219 = vmatpush1.msra.mxu0 0.0
    %220 = vmatprep.subr.mxu0 0.0
    %221 = vmatpush1.msra.mxu0 0.0
    %222 = vmatprep.subr.mxu0 0.0
    %223 = vmatpush1.msra.mxu0 0.0
    %224 = vmatprep.subr.mxu0 0.0
    %225 = vmatpush1.msra.mxu0 0.0
    %226 = vmatprep.subr.mxu0 0.0
    %227 = vmatpush1.msra.mxu0 0.0
    %228 = vmatprep.subr.mxu0 0.0
    %229 = vmatpush1.msra.mxu0 0.0
    %230 = vmatprep.subr.mxu0 0.0
    %231 = vmatpush1.msra.mxu0 0.0
    %232 = vmatprep.subr.mxu0 0.0
    %233 = vmatpush1.msra.mxu0 0.0
    %234 = vmatprep.subr.mxu0 0.0
    %235 = vmatpush1.msra.mxu0 0.0
    %236 = vmatprep.subr.mxu0 0.0
    %237 = vmatpush1.msra.mxu0 0.0
    %238 = vmatprep.subr.mxu0 0.0
    %239 = vmatpush1.msra.mxu0 0.0
    %240 = vmatprep.subr.mxu0 0.0
    %241 = vmatpush1.msra.mxu0 0.0
    %242 = vmatprep.subr.mxu0 0.0
    %243 = vmatpush1.msra.mxu0 0.0
    %244 = vmatprep.mubr.f32.mxu0 0.0
    %245 = vmatmul.mubr.f32.gmra.mrb[0].mxu0 %v156
    %v246 = vpop.f32.mrb[0].mxu0
    %v247 = vadd.f32 %v178, %v246
    %v248 = vpop.f32.mrb[0].mxu0
    %249 = vdwg.mxu0
    %vm250 = vcmp.gt.f32.partialorder %v247, 0.0
    %v251 = vmul.f32 %v247, 0.2
    %v252 = vsel %vm250, %v247, %v251
    %v253 = vld [vmem:[#allocation8] sm:$0xff]
    %v254 = vld [vmem:[#allocation8 + $0x8] sm:$0xff]
    %v255 = vld [vmem:[#allocation8 + $0x10] sm:$0xff]
    %v256 = vld [vmem:[#allocation8 + $0x18] sm:$0xff]
    %v257 = vld [vmem:[#allocation8 + $0x20] sm:$0xff]
    %v258 = vld [vmem:[#allocation8 + $0x28] sm:$0xff]
    %v259 = vld [vmem:[#allocation8 + $0x30] sm:$0xff]
    %v260 = vld [vmem:[#allocation8 + $0x38] sm:$0xff]
    %v261 = vld [vmem:[#allocation8 + $0x40] sm:$0xff]
    %v262 = vld [vmem:[#allocation8 + $0x48] sm:$0xff]
    %v263 = vld [vmem:[#allocation8 + $0x50] sm:$0xff]
    %v264 = vld [vmem:[#allocation8 + $0x58] sm:$0xff]
    %v265 = vld [vmem:[#allocation8 + $0x60] sm:$0xff]
    %v266 = vld [vmem:[#allocation8 + $0x68] sm:$0xff]
    %v267 = vld [vmem:[#allocation8 + $0x70] sm:$0xff]
    %v268 = vld [vmem:[#allocation8 + $0x78] sm:$0xff]
    %v269 = vld [vmem:[%s5] sm:$0x1]
    %v271 = vlaneseq
    %v272 = vshrl.u32 %v271, 7
    %v273 = vsub.s32 0, %v272
    %v274 = vrot.slane %v269, %v273
    %276 = vmatprep.subr.mxu0 0.0
    %277 = vmatpush1.msra.mxu0 %v253
    %278 = vmatprep.subr.mxu0 0.0
    %279 = vmatpush1.msra.mxu0 %v254
    %280 = vmatprep.subr.mxu0 0.0
    %281 = vmatpush1.msra.mxu0 %v255
    %282 = vmatprep.subr.mxu0 0.0
    %283 = vmatpush1.msra.mxu0 %v256
    %284 = vmatprep.subr.mxu0 0.0
    %285 = vmatpush1.msra.mxu0 %v257
    %286 = vmatprep.subr.mxu0 0.0
    %287 = vmatpush1.msra.mxu0 %v258
    %288 = vmatprep.subr.mxu0 0.0
    %289 = vmatpush1.msra.mxu0 %v259
    %290 = vmatprep.subr.mxu0 0.0
    %291 = vmatpush1.msra.mxu0 %v260
    %292 = vmatprep.subr.mxu0 0.0
    %293 = vmatpush1.msra.mxu0 %v261
    %294 = vmatprep.subr.mxu0 0.0
    %295 = vmatpush1.msra.mxu0 %v262
    %296 = vmatprep.subr.mxu0 0.0
    %297 = vmatpush1.msra.mxu0 %v263
    %298 = vmatprep.subr.mxu0 0.0
    %299 = vmatpush1.msra.mxu0 %v264
    %300 = vmatprep.subr.mxu0 0.0
    %301 = vmatpush1.msra.mxu0 %v265
    %302 = vmatprep.subr.mxu0 0.0
    %303 = vmatpush1.msra.mxu0 %v266
    %304 = vmatprep.subr.mxu0 0.0
    %305 = vmatpush1.msra.mxu0 %v267
    %306 = vmatprep.subr.mxu0 0.0
    %307 = vmatpush1.msra.mxu0 %v268
    %308 = vmatprep.subr.mxu0 0.0
    %309 = vmatpush1.msra.mxu0 0.0
    %310 = vmatprep.subr.mxu0 0.0
    %311 = vmatpush1.msra.mxu0 0.0
    %312 = vmatprep.subr.mxu0 0.0
    %313 = vmatpush1.msra.mxu0 0.0
    %314 = vmatprep.subr.mxu0 0.0
    %315 = vmatpush1.msra.mxu0 0.0
    %316 = vmatprep.subr.mxu0 0.0
    %317 = vmatpush1.msra.mxu0 0.0
    %318 = vmatprep.subr.mxu0 0.0
    %319 = vmatpush1.msra.mxu0 0.0
    %320 = vmatprep.subr.mxu0 0.0
    %321 = vmatpush1.msra.mxu0 0.0
    %322 = vmatprep.subr.mxu0 0.0
    %323 = vmatpush1.msra.mxu0 0.0
    %324 = vmatprep.subr.mxu0 0.0
    %325 = vmatpush1.msra.mxu0 0.0
    %326 = vmatprep.subr.mxu0 0.0
    %327 = vmatpush1.msra.mxu0 0.0
    %328 = vmatprep.subr.mxu0 0.0
    %329 = vmatpush1.msra.mxu0 0.0
    %330 = vmatprep.subr.mxu0 0.0
    %331 = vmatpush1.msra.mxu0 0.0
    %332 = vmatprep.subr.mxu0 0.0
    %333 = vmatpush1.msra.mxu0 0.0
    %334 = vmatprep.subr.mxu0 0.0
    %335 = vmatpush1.msra.mxu0 0.0
    %336 = vmatprep.subr.mxu0 0.0
    %337 = vmatpush1.msra.mxu0 0.0
    %338 = vmatprep.subr.mxu0 0.0
    %339 = vmatpush1.msra.mxu0 0.0
    %340 = vmatprep.mubr.f32.mxu0 0.0
    %341 = vmatmul.mubr.f32.gmra.mrb[0].mxu0 %v252
    %v342 = vpop.f32.mrb[0].mxu0
    %v343 = vadd.f32 %v274, %v342
    %v344 = vpop.f32.mrb[0].mxu0
    %345 = vdwg.mxu0
    %vm346 = vcmp.gt.f32.partialorder %v343, 0.0
    %v347 = vmul.f32 %v343, 0.2
    %v348 = vsel %vm346, %v343, %v347
    %v349 = vld [vmem:[#allocation10] sm:$0xff]
    %v350 = vld [vmem:[#allocation10 + $0x8] sm:$0xff]
    %v351 = vld [vmem:[#allocation10 + $0x10] sm:$0xff]
    %v352 = vld [vmem:[#allocation10 + $0x18] sm:$0xff]
    %v353 = vld [vmem:[#allocation10 + $0x20] sm:$0xff]
    %v354 = vld [vmem:[#allocation10 + $0x28] sm:$0xff]
    %v355 = vld [vmem:[#allocation10 + $0x30] sm:$0xff]
    %v356 = vld [vmem:[#allocation10 + $0x38] sm:$0xff]
    %v357 = vld [vmem:[#allocation10 + $0x40] sm:$0xff]
    %v358 = vld [vmem:[#allocation10 + $0x48] sm:$0xff]
    %v359 = vld [vmem:[#allocation10 + $0x50] sm:$0xff]
    %v360 = vld [vmem:[#allocation10 + $0x58] sm:$0xff]
    %v361 = vld [vmem:[#allocation10 + $0x60] sm:$0xff]
    %v362 = vld [vmem:[#allocation10 + $0x68] sm:$0xff]
    %v363 = vld [vmem:[#allocation10 + $0x70] sm:$0xff]
    %v364 = vld [vmem:[#allocation10 + $0x78] sm:$0xff]
    %v365 = vld [vmem:[#allocation10 + $0x80] sm:$0xff]
    %v366 = vld [vmem:[#allocation10 + $0x88] sm:$0xff]
    %v367 = vld [vmem:[#allocation10 + $0x90] sm:$0xff]
    %v368 = vld [vmem:[#allocation10 + $0x98] sm:$0xff]
    %v369 = vld [vmem:[#allocation10 + $0xa0] sm:$0xff]
    %v370 = vld [vmem:[#allocation10 + $0xa8] sm:$0xff]
    %v371 = vld [vmem:[#allocation10 + $0xb0] sm:$0xff]
    %v372 = vld [vmem:[#allocation10 + $0xb8] sm:$0xff]
    %v373 = vld [vmem:[#allocation10 + $0xc0] sm:$0xff]
    %v374 = vld [vmem:[#allocation10 + $0xc8] sm:$0xff]
    %v375 = vld [vmem:[#allocation10 + $0xd0] sm:$0xff]
    %v376 = vld [vmem:[#allocation10 + $0xd8] sm:$0xff]
    %v377 = vld [vmem:[#allocation10 + $0xe0] sm:$0xff]
    %v378 = vld [vmem:[#allocation10 + $0xe8] sm:$0xff]
    %v379 = vld [vmem:[#allocation10 + $0xf0] sm:$0xff]
    %v380 = vld [vmem:[#allocation10 + $0xf8] sm:$0xff]
    %v381 = vld [vmem:[%s7] sm:$0x3]
    %v383 = vlaneseq
    %v384 = vshrl.u32 %v383, 7
    %v385 = vsub.s32 0, %v384
    %v386 = vrot.slane %v381, %v385
    %v387 = vlaneseq
    %v388 = vshrl.u32 %v387, 7
    %v389 = vsub.s32 1, %v388
    %v390 = vrot.slane %v381, %v389
    %393 = vmatprep.subr.mxu0 %v350
    %394 = vmatpush1.msra.mxu0 %v349
    %395 = vmatprep.subr.mxu0 %v352
    %396 = vmatpush1.msra.mxu0 %v351
    %397 = vmatprep.subr.mxu0 %v354
    %398 = vmatpush1.msra.mxu0 %v353
    %399 = vmatprep.subr.mxu0 %v356
    %400 = vmatpush1.msra.mxu0 %v355
    %401 = vmatprep.subr.mxu0 %v358
    %402 = vmatpush1.msra.mxu0 %v357
    %403 = vmatprep.subr.mxu0 %v360
    %404 = vmatpush1.msra.mxu0 %v359
    %405 = vmatprep.subr.mxu0 %v362
    %406 = vmatpush1.msra.mxu0 %v361
    %407 = vmatprep.subr.mxu0 %v364
    %408 = vmatpush1.msra.mxu0 %v363
    %409 = vmatprep.subr.mxu0 %v366
    %410 = vmatpush1.msra.mxu0 %v365
    %411 = vmatprep.subr.mxu0 %v368
    %412 = vmatpush1.msra.mxu0 %v367
    %413 = vmatprep.subr.mxu0 %v370
    %414 = vmatpush1.msra.mxu0 %v369
    %415 = vmatprep.subr.mxu0 %v372
    %416 = vmatpush1.msra.mxu0 %v371
    %417 = vmatprep.subr.mxu0 %v374
    %418 = vmatpush1.msra.mxu0 %v373
    %419 = vmatprep.subr.mxu0 %v376
    %420 = vmatpush1.msra.mxu0 %v375
    %421 = vmatprep.subr.mxu0 %v378
    %422 = vmatpush1.msra.mxu0 %v377
    %423 = vmatprep.subr.mxu0 %v380
    %424 = vmatpush1.msra.mxu0 %v379
    %425 = vmatprep.subr.mxu0 0.0
    %426 = vmatpush1.msra.mxu0 0.0
    %427 = vmatprep.subr.mxu0 0.0
    %428 = vmatpush1.msra.mxu0 0.0
    %429 = vmatprep.subr.mxu0 0.0
    %430 = vmatpush1.msra.mxu0 0.0
    %431 = vmatprep.subr.mxu0 0.0
    %432 = vmatpush1.msra.mxu0 0.0
    %433 = vmatprep.subr.mxu0 0.0
    %434 = vmatpush1.msra.mxu0 0.0
    %435 = vmatprep.subr.mxu0 0.0
    %436 = vmatpush1.msra.mxu0 0.0
    %437 = vmatprep.subr.mxu0 0.0
    %438 = vmatpush1.msra.mxu0 0.0
    %439 = vmatprep.subr.mxu0 0.0
    %440 = vmatpush1.msra.mxu0 0.0
    %441 = vmatprep.subr.mxu0 0.0
    %442 = vmatpush1.msra.mxu0 0.0
    %443 = vmatprep.subr.mxu0 0.0
    %444 = vmatpush1.msra.mxu0 0.0
    %445 = vmatprep.subr.mxu0 0.0
    %446 = vmatpush1.msra.mxu0 0.0
    %447 = vmatprep.subr.mxu0 0.0
    %448 = vmatpush1.msra.mxu0 0.0
    %449 = vmatprep.subr.mxu0 0.0
    %450 = vmatpush1.msra.mxu0 0.0
    %451 = vmatprep.subr.mxu0 0.0
    %452 = vmatpush1.msra.mxu0 0.0
    %453 = vmatprep.subr.mxu0 0.0
    %454 = vmatpush1.msra.mxu0 0.0
    %455 = vmatprep.subr.mxu0 0.0
    %456 = vmatpush1.msra.mxu0 0.0
    %457 = vmatprep.mubr.f32.mxu0 0.0
    %458 = vmatmul.mubr.f32.gmra.mrb[0].mxu0 %v348
    %v459 = vpop.f32.mrb[0].mxu0
    %v460 = vadd.f32 %v386, %v459
    %v461 = vpop.f32.mrb[0].mxu0
    %v462 = vadd.f32 %v390, %v461
    %463 = vdwg.mxu0
    %v464 = vmul.f32 %v462, 0.5
    %v465 = vmul.f32 %v464, 1.442695
    %v466 = vpow.pop %v465
    %v467 = vld [vmem:[#allocation5] sm:$0xff]
    %v468 = vmul.f32 %v466, %v467
    %v469 = vadd.f32 %v460, %v468
    %v470 = vld [vmem:[#allocation11] sm:$0xff]
    %v471 = vld [vmem:[#allocation11 + $0x8] sm:$0xff]
    %v472 = vld [vmem:[#allocation11 + $0x10] sm:$0xff]
    %v473 = vld [vmem:[#allocation11 + $0x18] sm:$0xff]
    %v474 = vld [vmem:[#allocation11 + $0x20] sm:$0xff]
    %v475 = vld [vmem:[#allocation11 + $0x28] sm:$0xff]
    %v476 = vld [vmem:[#allocation11 + $0x30] sm:$0xff]
    %v477 = vld [vmem:[#allocation11 + $0x38] sm:$0xff]
    %v478 = vld [vmem:[#allocation11 + $0x40] sm:$0xff]
    %v479 = vld [vmem:[#allocation11 + $0x48] sm:$0xff]
    %v480 = vld [vmem:[#allocation11 + $0x50] sm:$0xff]
    %v481 = vld [vmem:[#allocation11 + $0x58] sm:$0xff]
    %v482 = vld [vmem:[#allocation11 + $0x60] sm:$0xff]
    %v483 = vld [vmem:[#allocation11 + $0x68] sm:$0xff]
    %v484 = vld [vmem:[#allocation11 + $0x70] sm:$0xff]
    %v485 = vld [vmem:[#allocation11 + $0x78] sm:$0xff]
    %v486 = vld [vmem:[%s9] sm:$0x1]
    %v488 = vlaneseq
    %v489 = vshrl.u32 %v488, 7
    %v490 = vsub.s32 0, %v489
    %v491 = vrot.slane %v486, %v490
    %493 = vmatprep.subr.mxu0 0.0
    %494 = vmatpush1.msra.mxu0 %v470
    %495 = vmatprep.subr.mxu0 0.0
    %496 = vmatpush1.msra.mxu0 %v471
    %497 = vmatprep.subr.mxu0 0.0
    %498 = vmatpush1.msra.mxu0 %v472
    %499 = vmatprep.subr.mxu0 0.0
    %500 = vmatpush1.msra.mxu0 %v473
    %501 = vmatprep.subr.mxu0 0.0
    %502 = vmatpush1.msra.mxu0 %v474
    %503 = vmatprep.subr.mxu0 0.0
    %504 = vmatpush1.msra.mxu0 %v475
    %505 = vmatprep.subr.mxu0 0.0
    %506 = vmatpush1.msra.mxu0 %v476
    %507 = vmatprep.subr.mxu0 0.0
    %508 = vmatpush1.msra.mxu0 %v477
    %509 = vmatprep.subr.mxu0 0.0
    %510 = vmatpush1.msra.mxu0 %v478
    %511 = vmatprep.subr.mxu0 0.0
    %512 = vmatpush1.msra.mxu0 %v479
    %513 = vmatprep.subr.mxu0 0.0
    %514 = vmatpush1.msra.mxu0 %v480
    %515 = vmatprep.subr.mxu0 0.0
    %516 = vmatpush1.msra.mxu0 %v481
    %517 = vmatprep.subr.mxu0 0.0
    %518 = vmatpush1.msra.mxu0 %v482
    %519 = vmatprep.subr.mxu0 0.0
    %520 = vmatpush1.msra.mxu0 %v483
    %521 = vmatprep.subr.mxu0 0.0
    %522 = vmatpush1.msra.mxu0 %v484
    %523 = vmatprep.subr.mxu0 0.0
    %524 = vmatpush1.msra.mxu0 %v485
    %525 = vmatprep.subr.mxu0 0.0
    %526 = vmatpush1.msra.mxu0 0.0
    %527 = vmatprep.subr.mxu0 0.0
    %528 = vmatpush1.msra.mxu0 0.0
    %529 = vmatprep.subr.mxu0 0.0
    %530 = vmatpush1.msra.mxu0 0.0
    %531 = vmatprep.subr.mxu0 0.0
    %532 = vmatpush1.msra.mxu0 0.0
    %533 = vmatprep.subr.mxu0 0.0
    %534 = vmatpush1.msra.mxu0 0.0
    %535 = vmatprep.subr.mxu0 0.0
    %536 = vmatpush1.msra.mxu0 0.0
    %537 = vmatprep.subr.mxu0 0.0
    %538 = vmatpush1.msra.mxu0 0.0
    %539 = vmatprep.subr.mxu0 0.0
    %540 = vmatpush1.msra.mxu0 0.0
    %541 = vmatprep.subr.mxu0 0.0
    %542 = vmatpush1.msra.mxu0 0.0
    %543 = vmatprep.subr.mxu0 0.0
    %544 = vmatpush1.msra.mxu0 0.0
    %545 = vmatprep.subr.mxu0 0.0
    %546 = vmatpush1.msra.mxu0 0.0
    %547 = vmatprep.subr.mxu0 0.0
    %548 = vmatpush1.msra.mxu0 0.0
    %549 = vmatprep.subr.mxu0 0.0
    %550 = vmatpush1.msra.mxu0 0.0
    %551 = vmatprep.subr.mxu0 0.0
    %552 = vmatpush1.msra.mxu0 0.0
    %553 = vmatprep.subr.mxu0 0.0
    %554 = vmatpush1.msra.mxu0 0.0
    %555 = vmatprep.subr.mxu0 0.0
    %556 = vmatpush1.msra.mxu0 0.0
    %557 = vmatprep.mubr.f32.mxu0 0.0
    %558 = vmatmul.mubr.f32.gmra.mrb[0].mxu0 %v469
    %v559 = vpop.f32.mrb[0].mxu0
    %v560 = vadd.f32 %v491, %v559
    %v561 = vpop.f32.mrb[0].mxu0
    %562 = vdwg.mxu0
    %vm563 = vcmp.gt.f32.partialorder %v560, 0.0
    %v564 = vmul.f32 %v560, 0.2
    %v565 = vsel %vm563, %v560, %v564
    %v566 = vld [vmem:[#allocation13] sm:$0xff]
    %v567 = vld [vmem:[#allocation13 + $0x8] sm:$0xff]
    %v568 = vld [vmem:[#allocation13 + $0x10] sm:$0xff]
    %v569 = vld [vmem:[#allocation13 + $0x18] sm:$0xff]
    %v570 = vld [vmem:[#allocation13 + $0x20] sm:$0xff]
    %v571 = vld [vmem:[#allocation13 + $0x28] sm:$0xff]
    %v572 = vld [vmem:[#allocation13 + $0x30] sm:$0xff]
    %v573 = vld [vmem:[#allocation13 + $0x38] sm:$0xff]
    %v574 = vld [vmem:[#allocation13 + $0x40] sm:$0xff]
    %v575 = vld [vmem:[#allocation13 + $0x48] sm:$0xff]
    %v576 = vld [vmem:[#allocation13 + $0x50] sm:$0xff]
    %v577 = vld [vmem:[#allocation13 + $0x58] sm:$0xff]
    %v578 = vld [vmem:[#allocation13 + $0x60] sm:$0xff]
    %v579 = vld [vmem:[#allocation13 + $0x68] sm:$0xff]
    %v580 = vld [vmem:[#allocation13 + $0x70] sm:$0xff]
    %v581 = vld [vmem:[#allocation13 + $0x78] sm:$0xff]
    %v582 = vld [vmem:[%s11] sm:$0x1]
    %v584 = vlaneseq
    %v585 = vshrl.u32 %v584, 7
    %v586 = vsub.s32 0, %v585
    %v587 = vrot.slane %v582, %v586
    %589 = vmatprep.subr.mxu0 0.0
    %590 = vmatpush1.msra.mxu0 %v566
    %591 = vmatprep.subr.mxu0 0.0
    %592 = vmatpush1.msra.mxu0 %v567
    %593 = vmatprep.subr.mxu0 0.0
    %594 = vmatpush1.msra.mxu0 %v568
    %595 = vmatprep.subr.mxu0 0.0
    %596 = vmatpush1.msra.mxu0 %v569
    %597 = vmatprep.subr.mxu0 0.0
    %598 = vmatpush1.msra.mxu0 %v570
    %599 = vmatprep.subr.mxu0 0.0
    %600 = vmatpush1.msra.mxu0 %v571
    %601 = vmatprep.subr.mxu0 0.0
    %602 = vmatpush1.msra.mxu0 %v572
    %603 = vmatprep.subr.mxu0 0.0
    %604 = vmatpush1.msra.mxu0 %v573
    %605 = vmatprep.subr.mxu0 0.0
    %606 = vmatpush1.msra.mxu0 %v574
    %607 = vmatprep.subr.mxu0 0.0
    %608 = vmatpush1.msra.mxu0 %v575
    %609 = vmatprep.subr.mxu0 0.0
    %610 = vmatpush1.msra.mxu0 %v576
    %611 = vmatprep.subr.mxu0 0.0
    %612 = vmatpush1.msra.mxu0 %v577
    %613 = vmatprep.subr.mxu0 0.0
    %614 = vmatpush1.msra.mxu0 %v578
    %615 = vmatprep.subr.mxu0 0.0
    %616 = vmatpush1.msra.mxu0 %v579
    %617 = vmatprep.subr.mxu0 0.0
    %618 = vmatpush1.msra.mxu0 %v580
    %619 = vmatprep.subr.mxu0 0.0
    %620 = vmatpush1.msra.mxu0 %v581
    %621 = vmatprep.subr.mxu0 0.0
    %622 = vmatpush1.msra.mxu0 0.0
    %623 = vmatprep.subr.mxu0 0.0
    %624 = vmatpush1.msra.mxu0 0.0
    %625 = vmatprep.subr.mxu0 0.0
    %626 = vmatpush1.msra.mxu0 0.0
    %627 = vmatprep.subr.mxu0 0.0
    %628 = vmatpush1.msra.mxu0 0.0
    %629 = vmatprep.subr.mxu0 0.0
    %630 = vmatpush1.msra.mxu0 0.0
    %631 = vmatprep.subr.mxu0 0.0
    %632 = vmatpush1.msra.mxu0 0.0
    %633 = vmatprep.subr.mxu0 0.0
    %634 = vmatpush1.msra.mxu0 0.0
    %635 = vmatprep.subr.mxu0 0.0
    %636 = vmatpush1.msra.mxu0 0.0
    %637 = vmatprep.subr.mxu0 0.0
    %638 = vmatpush1.msra.mxu0 0.0
    %639 = vmatprep.subr.mxu0 0.0
    %640 = vmatpush1.msra.mxu0 0.0
    %641 = vmatprep.subr.mxu0 0.0
    %642 = vmatpush1.msra.mxu0 0.0
    %643 = vmatprep.subr.mxu0 0.0
    %644 = vmatpush1.msra.mxu0 0.0
    %645 = vmatprep.subr.mxu0 0.0
    %646 = vmatpush1.msra.mxu0 0.0
    %647 = vmatprep.subr.mxu0 0.0
    %648 = vmatpush1.msra.mxu0 0.0
    %649 = vmatprep.subr.mxu0 0.0
    %650 = vmatpush1.msra.mxu0 0.0
    %651 = vmatprep.subr.mxu0 0.0
    %652 = vmatpush1.msra.mxu0 0.0
    %653 = vmatprep.mubr.f32.mxu0 0.0
    %654 = vmatmul.mubr.f32.gmra.mrb[0].mxu0 %v565
    %v655 = vpop.f32.mrb[0].mxu0
    %v656 = vadd.f32 %v587, %v655
    %v657 = vpop.f32.mrb[0].mxu0
    %658 = vdwg.mxu0
    %vm659 = vcmp.gt.f32.partialorder %v656, 0.0
    %v660 = vmul.f32 %v656, 0.2
    %v661 = vsel %vm659, %v656, %v660
    %v662 = vld [vmem:[#allocation14] sm:$0xff]
    %v663 = vld [vmem:[#allocation14 + $0x8] sm:$0xff]
    %v664 = vld [vmem:[#allocation14 + $0x10] sm:$0xff]
    %v665 = vld [vmem:[#allocation14 + $0x18] sm:$0xff]
    %v666 = vld [vmem:[#allocation14 + $0x20] sm:$0xff]
    %v667 = vld [vmem:[#allocation14 + $0x28] sm:$0xff]
    %v668 = vld [vmem:[#allocation14 + $0x30] sm:$0xff]
    %v669 = vld [vmem:[#allocation14 + $0x38] sm:$0xff]
    %v670 = vld [vmem:[#allocation14 + $0x40] sm:$0xff]
    %v671 = vld [vmem:[#allocation14 + $0x48] sm:$0xff]
    %v672 = vld [vmem:[#allocation14 + $0x50] sm:$0xff]
    %v673 = vld [vmem:[#allocation14 + $0x58] sm:$0xff]
    %v674 = vld [vmem:[#allocation14 + $0x60] sm:$0xff]
    %v675 = vld [vmem:[#allocation14 + $0x68] sm:$0xff]
    %v676 = vld [vmem:[#allocation14 + $0x70] sm:$0xff]
    %v677 = vld [vmem:[#allocation14 + $0x78] sm:$0xff]
    %v678 = vld [vmem:[%s13] sm:$0x1]
    %v680 = vlaneseq
    %v681 = vshrl.u32 %v680, 7
    %v682 = vsub.s32 0, %v681
    %v683 = vrot.slane %v678, %v682
    %685 = vmatprep.subr.mxu0 0.0
    %686 = vmatpush1.msra.mxu0 %v662
    %687 = vmatprep.subr.mxu0 0.0
    %688 = vmatpush1.msra.mxu0 %v663
    %689 = vmatprep.subr.mxu0 0.0
    %690 = vmatpush1.msra.mxu0 %v664
    %691 = vmatprep.subr.mxu0 0.0
    %692 = vmatpush1.msra.mxu0 %v665
    %693 = vmatprep.subr.mxu0 0.0
    %694 = vmatpush1.msra.mxu0 %v666
    %695 = vmatprep.subr.mxu0 0.0
    %696 = vmatpush1.msra.mxu0 %v667
    %697 = vmatprep.subr.mxu0 0.0
    %698 = vmatpush1.msra.mxu0 %v668
    %699 = vmatprep.subr.mxu0 0.0
    %700 = vmatpush1.msra.mxu0 %v669
    %701 = vmatprep.subr.mxu0 0.0
    %702 = vmatpush1.msra.mxu0 %v670
    %703 = vmatprep.subr.mxu0 0.0
    %704 = vmatpush1.msra.mxu0 %v671
    %705 = vmatprep.subr.mxu0 0.0
    %706 = vmatpush1.msra.mxu0 %v672
    %707 = vmatprep.subr.mxu0 0.0
    %708 = vmatpush1.msra.mxu0 %v673
    %709 = vmatprep.subr.mxu0 0.0
    %710 = vmatpush1.msra.mxu0 %v674
    %711 = vmatprep.subr.mxu0 0.0
    %712 = vmatpush1.msra.mxu0 %v675
    %713 = vmatprep.subr.mxu0 0.0
    %714 = vmatpush1.msra.mxu0 %v676
    %715 = vmatprep.subr.mxu0 0.0
    %716 = vmatpush1.msra.mxu0 %v677
    %717 = vmatprep.subr.mxu0 0.0
    %718 = vmatpush1.msra.mxu0 0.0
    %719 = vmatprep.subr.mxu0 0.0
    %720 = vmatpush1.msra.mxu0 0.0
    %721 = vmatprep.subr.mxu0 0.0
    %722 = vmatpush1.msra.mxu0 0.0
    %723 = vmatprep.subr.mxu0 0.0
    %724 = vmatpush1.msra.mxu0 0.0
    %725 = vmatprep.subr.mxu0 0.0
    %726 = vmatpush1.msra.mxu0 0.0
    %727 = vmatprep.subr.mxu0 0.0
    %728 = vmatpush1.msra.mxu0 0.0
    %729 = vmatprep.subr.mxu0 0.0
    %730 = vmatpush1.msra.mxu0 0.0
    %731 = vmatprep.subr.mxu0 0.0
    %732 = vmatpush1.msra.mxu0 0.0
    %733 = vmatprep.subr.mxu0 0.0
    %734 = vmatpush1.msra.mxu0 0.0
    %735 = vmatprep.subr.mxu0 0.0
    %736 = vmatpush1.msra.mxu0 0.0
    %737 = vmatprep.subr.mxu0 0.0
    %738 = vmatpush1.msra.mxu0 0.0
    %739 = vmatprep.subr.mxu0 0.0
    %740 = vmatpush1.msra.mxu0 0.0
    %741 = vmatprep.subr.mxu0 0.0
    %742 = vmatpush1.msra.mxu0 0.0
    %743 = vmatprep.subr.mxu0 0.0
    %744 = vmatpush1.msra.mxu0 0.0
    %745 = vmatprep.subr.mxu0 0.0
    %746 = vmatpush1.msra.mxu0 0.0
    %747 = vmatprep.subr.mxu0 0.0
    %748 = vmatpush1.msra.mxu0 0.0
    %749 = vmatprep.mubr.f32.mxu0 0.0
    %750 = vmatmul.mubr.f32.gmra.mrb[0].mxu0 %v661
    %v751 = vpop.f32.mrb[0].mxu0
    %v752 = vadd.f32 %v683, %v751
    %v753 = vpop.f32.mrb[0].mxu0
    %754 = vdwg.mxu0
    %755 = vst [vmem:[#allocation16] sm:$0xff] %v752
    %756 = vst [vmem:[#allocation17] sm:$0xff] %v460
    %757 = vst [vmem:[#allocation17 + $0x8] sm:$0xff] %v462
    // Predicated region
    $region90: #{tpu_custom_call.1} parent=1 // pred_check
      _
    $region91: #{tpu_custom_call.1} parent=1 // pred_check_branch
      %759 = sbr.rel (0) target = $region93
    $region92: #{tpu_custom_call.1} parent=1 // pred_region
      %s761 = ssub.s32 128, 128
      %762 = vsyncadd [#allocation4], %s761
      %s764 = sshll.u32 [#allocation16], 4
      %s765 = int_to_ptr.vmem [resolvable:$true] %s764
      %767 = dma.vmem_to_hbm [thread:$0]  %s765, 128, %s14, [#allocation4]
    $region93: #{tpu_custom_call.1} parent=1 // pred_fallthru
      _
    // Predicated region
    $region94: #{tpu_custom_call.1} parent=1 // pred_check
      _
    $region95: #{tpu_custom_call.1} parent=1 // pred_check_branch
      %769 = sbr.rel (0) target = $region97
    $region96: #{tpu_custom_call.1} parent=1 // pred_region
      %s771 = ssub.s32 256, 256
      %772 = vsyncadd [#allocation18], %s771
      %s774 = sshll.u32 [#allocation17], 4
      %s775 = int_to_ptr.vmem [resolvable:$true] %s774
      %777 = dma.vmem_to_hbm [thread:$0]  %s775, 256, %s15, [#allocation18]
    $region97: #{tpu_custom_call.1} parent=1 // pred_fallthru
      _
    // Predicated region
    $region98: #{tpu_custom_call.1} parent=1 // pred_check
      _
    $region99: #{tpu_custom_call.1} parent=1 // pred_check_branch
      %779 = sbr.rel (0) target = $region101
    $region100: #{tpu_custom_call.1} parent=1 // pred_region
      %780 = dma.done [#allocation4], 128
    $region101: #{tpu_custom_call.1} parent=1 // pred_fallthru
      _
    // Predicated region
    $region102: #{tpu_custom_call.1} parent=1 // pred_check
      _
    $region103: #{tpu_custom_call.1} parent=1 // pred_check_branch
      %782 = sbr.rel (0) target = $region105
    $region104: #{tpu_custom_call.1} parent=1 // pred_region
      %783 = dma.done [#allocation18], 256
    $region105: #{tpu_custom_call.1} parent=1 // pred_fallthru
      _
    %784 = vsyncpa [#allocation3], 1
    %785 = vsyncpa [#allocation6], 1
    %786 = vsyncpa [#allocation9], 1
    %787 = vsyncpa [#allocation12], 1
    %788 = vsyncpa [#allocation15], 1
    %789 = vsyncpa [#allocation4], 1
    %790 = vsyncpa [#allocation18], 1

</llo_original>
